<compile_context>
chip_gen: v5e
topology: v5e:2x2
jax: 0.10.0
libtpu: 0.0.40
codegen_flags: <defaults>
</compile_context>

<pallas_src>
import jax
import jax.numpy as jnp
from jax.experimental import pallas as pl
from jax.experimental.pallas import tpu as pltpu

LANE = 128           # TPU lane width: output dim padded to this
SUBLANE = 8          # f32 sublane count: batch padded to a multiple of this
NEG_INF = -1e30      # pad-column logit (finite -> no inf-inf NaNs)


# --------------------------------------------------------------------------
# Kernel: one MXU pass for fc1 (one-hot @ folded table), ReLU, one MXU pass
# for fc2 (lane-dense, padded to 128), stable softmax with EUP reciprocal.
# --------------------------------------------------------------------------
def _fused_mlp_softmax_kernel(oh_ref,   # VMEM (Bp, S*V)  bf16 one-hot
                              t_ref,    # VMEM (S*V, H)   bf16 fused emb@W1 (+b1/S)
                              w2_ref,   # VMEM (H, LANE)  bf16, zero-padded cols
                              b2_ref,   # VMEM (1, LANE)  f32, pad cols = NEG_INF
                              out_ref): # VMEM (Bp, LANE) f32
    # ---- fc1: embedding gather + first matmul as a single bf16 MXU matmul ----
    hidden = jnp.dot(oh_ref[...], t_ref[...],
                     preferred_element_type=jnp.float32)      # (Bp, H) f32 acc
    hidden = jnp.maximum(hidden, 0.0)                         # ReLU (f32 VPU)

    # ---- fc2: lane-dense (Bp, H) @ (H, 128) on the MXU ----
    logits = jnp.dot(hidden.astype(jnp.bfloat16), w2_ref[...],
                     preferred_element_type=jnp.float32)      # (Bp, LANE)
    logits = logits + b2_ref[...]                             # pad cols ~ -1e30

    # ---- numerically stable softmax over the 128 lanes ----
    m = jnp.max(logits, axis=-1, keepdims=True)               # finite (real cols)
    e = jnp.exp(logits - m)                                   # pad cols -> 0
    denom = jnp.sum(e, axis=-1, keepdims=True)
    inv = pl.reciprocal(denom, approx=True)                   # EUP slot
    inv = inv * (2.0 - denom * inv)                           # Newton -> ~f32 acc
    out_ref[...] = e * inv


# --------------------------------------------------------------------------
# One-time parameter fold.
# --------------------------------------------------------------------------
def fold_params(emb_table, w1, b1, w2, b2, sequence_length):
    """Build the fused emb@W1 table (b1 folded in) and lane-pad fc2.

    emb_table: (V, H); w1: (S*H, H) pre-transposed; b1: (H,);
    w2: (H, O) pre-transposed; b2: (O,).
    Returns (table (S*V, H) bf16, w2_pad (H, 128) bf16, b2_pad (1, 128) f32).
    """
    vocab, hidden = emb_table.shape
    out_dim = w2.shape[1]
    assert 1 <= out_dim <= LANE, "output_size must be in [1, 128]"
    assert w1.shape == (hidden * sequence_length, hidden)

    # T[s, v, :] = emb_table[v, :] @ w1[s*H:(s+1)*H, :]
    w1_r = w1.reshape(sequence_length, hidden, hidden)
    t = jnp.einsum('vh,shk->svk', emb_table, w1_r)            # (S, V, H) f32
    # Each batch row sums exactly S table rows -> fold b1 as b1/S per row.
    t = t + (b1 / sequence_length)[None, None, :]
    table = t.reshape(sequence_length * vocab, hidden).astype(jnp.bfloat16)

    pad = LANE - out_dim
    w2_pad = jnp.pad(w2, ((0, 0), (0, pad))).astype(jnp.bfloat16)   # zero cols
    b2_pad = jnp.concatenate(
        [b2, jnp.full((pad,), NEG_INF, dtype=b2.dtype)]).reshape(1, LANE)
    return table, w2_pad, b2_pad


def _build_onehot(x_tokens, vocab, batch_padded):
    """(B, S) int32 tokens -> (Bp, S*V) bf16 one-hot (flattened seq x vocab)."""
    B, S = x_tokens.shape
    flat_idx = x_tokens + (jnp.arange(S, dtype=jnp.int32) * vocab)[None, :]
    oh = jax.nn.one_hot(flat_idx, S * vocab, dtype=jnp.bfloat16)    # (B, S, S*V)
    oh = jnp.sum(oh, axis=1)                                        # (B, S*V)
    if batch_padded > B:
        oh = jnp.pad(oh, ((0, batch_padded - B), (0, 0)))
    return oh


# --------------------------------------------------------------------------
# Forward wrapper.
# --------------------------------------------------------------------------
def constant_sequence_model_forward(x_tokens, table, w2_pad, b2_pad,
                                    output_size):
    """x_tokens: (B, S) int32 token ids -> (B, output_size) f32 softmax."""
    B, S = x_tokens.shape
    SV, H = table.shape
    V = SV // S
    OP = w2_pad.shape[1]
    Bp = pl.cdiv(B, SUBLANE) * SUBLANE            # full-sublane output tile

    onehot = _build_onehot(x_tokens, V, Bp)       # (Bp, S*V) bf16

    cost = pl.CostEstimate(
        flops=2 * Bp * SV * H + 2 * Bp * H * OP + 6 * Bp * OP,
        transcendentals=Bp * OP + 2 * Bp,         # exp over padded 128 lanes
        bytes_accessed=(2 * onehot.size + 2 * table.size + 2 * w2_pad.size
                        + 4 * b2_pad.size + 4 * Bp * OP),
    )

    # No grid: everything is a single-buffered, full-array VMEM resident
    # (~70 KiB total), so there is no double-buffer / prologue-DMA overhead.
    out_padded = pl.pallas_call(
        _fused_mlp_softmax_kernel,
        out_shape=jax.ShapeDtypeStruct((Bp, OP), jnp.float32),
        in_specs=[
            pl.BlockSpec(memory_space=pltpu.MemorySpace.VMEM),  # one-hot
            pl.BlockSpec(memory_space=pltpu.MemorySpace.VMEM),  # folded table
            pl.BlockSpec(memory_space=pltpu.MemorySpace.VMEM),  # w2 (padded)
            pl.BlockSpec(memory_space=pltpu.MemorySpace.VMEM),  # b2 (padded)
        ],
        out_specs=pl.BlockSpec(memory_space=pltpu.MemorySpace.VMEM),
        cost_estimate=cost,
    )(onehot, table, w2_pad, b2_pad)

    # TODO(synk): if batch grows, tile it: grid=(cdiv(Bp, TM),), batch axis
    # "parallel" (dual-TC sharding on v7x), constant (0, 0) index_maps for
    # table/w2/b2 so weights stay VMEM-resident (v6e), size TM against v7x's
    # 64 MiB VMEM (2 bufs x (one-hot + output tile) + resident weights), and
    # keep output tiles multiples of (8, 128) for unmasked stores on v5e.
    return out_padded[:B, :output_size]


# --------------------------------------------------------------------------
# Parameter init mirroring the nn.Module shapes.
# --------------------------------------------------------------------------
def init_params(key, input_size, hidden_size, output_size, sequence_length):
    k_emb, k_w1, k_b1, k_w2, k_b2 = jax.random.split(key, 5)

    # nn.Embedding(input_size, hidden_size): N(0, 1)
    emb_table = jax.random.normal(k_emb, (input_size, hidden_size),
                                  dtype=jnp.float32)

    # nn.Linear(hidden*seq, hidden): U(-1/sqrt(fan_in), 1/sqrt(fan_in))
    fan_in1 = hidden_size * sequence_length
    bound1 = 1.0 / jnp.sqrt(fan_in1)
    w1 = jax.random.uniform(k_w1, (fan_in1, hidden_size),
                            minval=-bound1, maxval=bound1, dtype=jnp.float32)
    b1 = jax.random.uniform(k_b1, (hidden_size,),
                            minval=-bound1, maxval=bound1, dtype=jnp.float32)

    # nn.Linear(hidden, output_size)
    bound2 = 1.0 / jnp.sqrt(hidden_size)
    w2 = jax.random.uniform(k_w2, (hidden_size, output_size),
                            minval=-bound2, maxval=bound2, dtype=jnp.float32)
    b2 = jax.random.uniform(k_b2, (output_size,),
                            minval=-bound2, maxval=bound2, dtype=jnp.float32)

    return emb_table, w1, b1, w2, b2


if __name__ == "__main__":
    # Small shapes consistent with the module.
    INPUT_SIZE = 16      # vocab size
    HIDDEN = 32
    OUTPUT = 10
    SEQ = 8
    BATCH = 2

    key = jax.random.PRNGKey(0)
    k_params, k_x = jax.random.split(key)

    emb_table, w1, b1, w2, b2 = init_params(
        k_params, INPUT_SIZE, HIDDEN, OUTPUT, SEQ)

    # One-time fold: emb@W1 lookup table (+b1/S, bf16) + lane-dense fc2 pad.
    table, w2_pad, b2_pad = fold_params(emb_table, w1, b1, w2, b2, SEQ)

    x_tokens = jax.random.randint(k_x, (BATCH, SEQ), 0, INPUT_SIZE,
                                  dtype=jnp.int32)

    out = constant_sequence_model_forward(x_tokens, table, w2_pad, b2_pad,
                                          OUTPUT)
    out = jax.block_until_ready(out)

    # Pure-JAX f32 reference of the original forward pass.
    embedded = jnp.take(emb_table, x_tokens, axis=0).reshape(BATCH, -1)
    hidden = jnp.maximum(embedded @ w1 + b1, 0.0)
    logits = hidden @ w2 + b2
    ref = jax.nn.softmax(logits, axis=1)

    assert out.shape == (BATCH, OUTPUT)
    # bf16 weights vs. f32 reference -> modest tolerance on the probabilities.
    assert jnp.allclose(out, ref, atol=5e-3, rtol=5e-3), \
        float(jnp.max(jnp.abs(out - ref)))
    assert jnp.allclose(jnp.sum(out, axis=1), 1.0, atol=1e-4)

    print("KERNEL_OK")
</pallas_src>

<mosaic_0001>
module attributes {stable_mosaic.version = 11 : i64} {
  func.func @_fused_mlp_softmax_kernel(%arg0: memref<8x128xbf16, #tpu.memory_space<vmem>>, %arg1: memref<128x32xbf16, #tpu.memory_space<vmem>>, %arg2: memref<32x128xbf16, #tpu.memory_space<vmem>>, %arg3: memref<1x128xf32, #tpu.memory_space<vmem>>, %arg4: memref<8x128xf32, #tpu.memory_space<vmem>>) attributes {dimension_semantics = [], scalar_prefetch = 0 : i64, scratch_operands = 0 : i64, tpu.core_type = #tpu.core_type<tc>} {
    %c0 = arith.constant 0 : index
    %c0_0 = arith.constant 0 : index
    %0 = vector.load %arg0[%c0, %c0_0] : memref<8x128xbf16, #tpu.memory_space<vmem>>, vector<8x128xbf16>
    %c0_1 = arith.constant 0 : index
    %c0_2 = arith.constant 0 : index
    %1 = vector.load %arg1[%c0_1, %c0_2] : memref<128x32xbf16, #tpu.memory_space<vmem>>, vector<128x32xbf16>
    %cst = arith.constant dense<0.000000e+00> : vector<8x32xf32>
    %2 = tpu.matmul %0, %1, %cst {dimension_numbers = #tpu.dot_dimension_numbers<[1], [0], [0], [1], [0, 0, 1, 1], [], []>} : vector<8x128xbf16>, vector<128x32xbf16>, vector<8x32xf32> -> vector<8x32xf32>
    %cst_3 = arith.constant 0.000000e+00 : f32
    %3 = vector.broadcast %cst_3 : f32 to vector<8x32xf32>
    %4 = arith.maximumf %2, %3 : vector<8x32xf32>
    %5 = arith.truncf %4 : vector<8x32xf32> to vector<8x32xbf16>
    %c0_4 = arith.constant 0 : index
    %c0_5 = arith.constant 0 : index
    %6 = vector.load %arg2[%c0_4, %c0_5] : memref<32x128xbf16, #tpu.memory_space<vmem>>, vector<32x128xbf16>
    %cst_6 = arith.constant dense<0.000000e+00> : vector<8x128xf32>
    %7 = tpu.matmul %5, %6, %cst_6 {dimension_numbers = #tpu.dot_dimension_numbers<[1], [0], [0], [1], [0, 0, 1, 1], [], []>} : vector<8x32xbf16>, vector<32x128xbf16>, vector<8x128xf32> -> vector<8x128xf32>
    %c0_7 = arith.constant 0 : index
    %c0_8 = arith.constant 0 : index
    %8 = vector.load %arg3[%c0_7, %c0_8] : memref<1x128xf32, #tpu.memory_space<vmem>>, vector<1x128xf32>
    %9 = vector.broadcast %8 : vector<1x128xf32> to vector<8x128xf32>
    %10 = arith.addf %7, %9 : vector<8x128xf32>
    %cst_9 = arith.constant dense<0xFF800000> : vector<8xf32>
    %11 = vector.multi_reduction <maximumf>, %10, %cst_9 [1] : vector<8x128xf32> to vector<8xf32>
    %12 = vector.shape_cast %11 : vector<8xf32> to vector<8x1xf32>
    %13 = vector.broadcast %12 : vector<8x1xf32> to vector<8x128xf32>
    %14 = arith.subf %10, %13 : vector<8x128xf32>
    %15 = math.exp %14 : vector<8x128xf32>
    %cst_10 = arith.constant dense<0.000000e+00> : vector<8xf32>
    %16 = vector.multi_reduction <add>, %15, %cst_10 [1] : vector<8x128xf32> to vector<8xf32>
    %17 = vector.shape_cast %16 : vector<8xf32> to vector<8x1xf32>
    %18 = tpu.reciprocal %17 {approx = true} : vector<8x1xf32> -> vector<8x1xf32>
    %19 = arith.mulf %17, %18 : vector<8x1xf32>
    %cst_11 = arith.constant 2.000000e+00 : f32
    %20 = vector.broadcast %cst_11 : f32 to vector<8x1xf32>
    %21 = arith.subf %20, %19 : vector<8x1xf32>
    %22 = arith.mulf %18, %21 : vector<8x1xf32>
    %23 = vector.broadcast %22 : vector<8x1xf32> to vector<8x128xf32>
    %24 = arith.mulf %15, %23 : vector<8x128xf32>
    %c0_12 = arith.constant 0 : index
    %c0_13 = arith.constant 0 : index
    %25 = vector.load %arg4[%c0_12, %c0_13] : memref<8x128xf32, #tpu.memory_space<vmem>>, vector<8x128xf32>
    tpu.vector_store %arg4[%c0_12, %c0_13], %24 {strides = array<i32>} : memref<8x128xf32, #tpu.memory_space<vmem>>, vector<8x128xf32>,
    return
  }
}

</mosaic_0001>

<llo_original>
// kernel: tpu_custom_call.1
$region0: #{tpu_custom_call.1}
  #allocation0 [shape = 'u32[]', space=smem, size = 0x4, offset = 0x4, fixed_abs, tag = 'smem constant byte address 0x4 - core index']
  #allocation1 [shape = 'u32[72,128]{1,0:T(1,128)}', space=vmem, size = 0x9000, scoped, tag = 'internal scratch']
  %s0 = inlined_call_operand.vmem [shape: bf16[8,128], index: 0, kind: input, shape index: {}]
  %s1 = inlined_call_operand.vmem [shape: bf16[128,32], index: 1, kind: input, shape index: {}]
  %s2 = inlined_call_operand.vmem [shape: bf16[32,128], index: 2, kind: input, shape index: {}]
  %s3 = inlined_call_operand.vmem [shape: f32[1,128], index: 3, kind: input, shape index: {}]
  %s4 = inlined_call_operand.hbm [shape: f32[8,128], index: 4, kind: output, shape index: {}]
  %s5 = sld [smem:[#allocation0]]
  $region26: #{tpu_custom_call.1} parent=0
    _
  %s7 = ssub.s32 1, %s5
  %s8 = scalar_select 0, %s7, %s5
  $region1: #{tpu_custom_call.1} parent=0
    #allocation2 [shape = 'u8[4096]{0}', space=vmem, size = 0x1000, scoped, tag = 'output window, operand 0, single buffered']
    #allocation3 [shape = 's32[1]{0}', space=sflag, size = 0x4, scoped, tag = 'scoped memory for tpu_custom_call.1']
    %9 = vsyncpa [#allocation3], 0
    // Predicated region
    $region2: #{tpu_custom_call.1} parent=1 // pred_check
      _
    $region3: #{tpu_custom_call.1} parent=1 // pred_check_branch
      %11 = sbr.rel (0) target = $region5
    $region4: #{tpu_custom_call.1} parent=1 // pred_region
      _
    $region5: #{tpu_custom_call.1} parent=1 // pred_fallthru
      _
    // Predicated region
    $region6: #{tpu_custom_call.1} parent=1 // pred_check
      _
    $region7: #{tpu_custom_call.1} parent=1 // pred_check_branch
      %13 = sbr.rel (0) target = $region9
    $region8: #{tpu_custom_call.1} parent=1 // pred_region
      _
    $region9: #{tpu_custom_call.1} parent=1 // pred_fallthru
      _
    // Predicated region
    $region10: #{tpu_custom_call.1} parent=1 // pred_check
      _
    $region11: #{tpu_custom_call.1} parent=1 // pred_check_branch
      %15 = sbr.rel (0) target = $region13
    $region12: #{tpu_custom_call.1} parent=1 // pred_region
      _
    $region13: #{tpu_custom_call.1} parent=1 // pred_fallthru
      _
    // Predicated region
    $region14: #{tpu_custom_call.1} parent=1 // pred_check
      _
    $region15: #{tpu_custom_call.1} parent=1 // pred_check_branch
      %17 = sbr.rel (0) target = $region17
    $region16: #{tpu_custom_call.1} parent=1 // pred_region
      _
    $region17: #{tpu_custom_call.1} parent=1 // pred_fallthru
      _
    %v19 = vld [vmem:[%s0] sm:$0xf]
    %v20 = vld [vmem:[%s1] sm:$0xf]
    %v21 = vld [vmem:[%s1 + $0x4] sm:$0xf]
    %v22 = vld [vmem:[%s1 + $0x8] sm:$0xf]
    %v23 = vld [vmem:[%s1 + $0xc] sm:$0xf]
    %v24 = vld [vmem:[%s1 + $0x10] sm:$0xf]
    %v25 = vld [vmem:[%s1 + $0x14] sm:$0xf]
    %v26 = vld [vmem:[%s1 + $0x18] sm:$0xf]
    %v27 = vld [vmem:[%s1 + $0x1c] sm:$0xf]
    %v28 = vld [vmem:[%s1 + $0x20] sm:$0xf]
    %v29 = vld [vmem:[%s1 + $0x24] sm:$0xf]
    %v30 = vld [vmem:[%s1 + $0x28] sm:$0xf]
    %v31 = vld [vmem:[%s1 + $0x2c] sm:$0xf]
    %v32 = vld [vmem:[%s1 + $0x30] sm:$0xf]
    %v33 = vld [vmem:[%s1 + $0x34] sm:$0xf]
    %v34 = vld [vmem:[%s1 + $0x38] sm:$0xf]
    %v35 = vld [vmem:[%s1 + $0x3c] sm:$0xf]
    %v52 = vunpack.c.l.b16 %v20
    %v53 = vunpack.c.l.b16 %v21
    %v54 = vunpack.c.l.b16 %v22
    %v55 = vunpack.c.l.b16 %v23
    %v56 = vunpack.c.l.b16 %v24
    %v57 = vunpack.c.l.b16 %v25
    %v58 = vunpack.c.l.b16 %v26
    %v59 = vunpack.c.l.b16 %v27
    %v60 = vunpack.c.l.b16 %v28
    %v61 = vunpack.c.l.b16 %v29
    %v62 = vunpack.c.l.b16 %v30
    %v63 = vunpack.c.l.b16 %v31
    %v64 = vunpack.c.l.b16 %v32
    %v65 = vunpack.c.l.b16 %v33
    %v66 = vunpack.c.l.b16 %v34
    %v67 = vunpack.c.l.b16 %v35
    %v68 = vpack.c.b16 %v53, %v52
    %v69 = vpack.c.b16 %v55, %v54
    %v70 = vpack.c.b16 %v57, %v56
    %v71 = vpack.c.b16 %v59, %v58
    %v72 = vpack.c.b16 %v61, %v60
    %v73 = vpack.c.b16 %v63, %v62
    %v74 = vpack.c.b16 %v65, %v64
    %v75 = vpack.c.b16 %v67, %v66
    %84 = vmatpush.bf16.msra.mxu0 %v75
    %85 = vmatpush.bf16.msra.mxu0 %v74
    %86 = vmatpush.bf16.msra.mxu0 %v73
    %87 = vmatpush.bf16.msra.mxu0 %v72
    %88 = vmatpush.bf16.msra.mxu0 %v71
    %89 = vmatpush.bf16.msra.mxu0 %v70
    %90 = vmatpush.bf16.msra.mxu0 %v69
    %91 = vmatpush.bf16.msra.mxu0 %v68
    %92 = vmatmul.bf16.gmra.mxu0 %v19
    %v93 = vpop.f32.mrf.mxu0
    %v94 = vadd.f32 0.0, %v93
    %v95 = vpop.f32.mrf.mxu0
    %96 = vdwg.mxu0
    %v97 = vmax.f32 %v94, 0.0
    %v98 = vpack.c.bf16 %v97, %v97
    %v99 = vld [vmem:[%s2] sm:$0xf]
    %v100 = vld [vmem:[%s2 + $0x4] sm:$0xf]
    %v101 = vld [vmem:[%s2 + $0x8] sm:$0xf]
    %v102 = vld [vmem:[%s2 + $0xc] sm:$0xf]
    %v103 = vld [vmem:[%s3] sm:$0x1]
    %v105 = vperm.slane %v103, 0
    %v111 = vunpack.c.l.b16 %v99
    %v112 = vunpack.c.l.b16 %v100
    %v113 = vunpack.c.l.b16 %v101
    %v114 = vunpack.c.l.b16 %v102
    %v115 = vpack.c.b16 %v112, %v111
    %v116 = vpack.c.b16 %v114, %v113
    %vm119 = vcmask 261120
    %v121 = vsel %vm119, %v98, 0
    %123 = vmatpush.bf16.msra.mxu0 0
    %124 = vmatpush.bf16.msra.mxu0 0
    %125 = vmatpush.bf16.msra.mxu0 0
    %126 = vmatpush.bf16.msra.mxu0 0
    %127 = vmatpush.bf16.msra.mxu0 0
    %128 = vmatpush.bf16.msra.mxu0 0
    %129 = vmatpush.bf16.msra.mxu0 %v116
    %130 = vmatpush.bf16.msra.mxu0 %v115
    %131 = vmatmul.bf16.gmra.mxu0 %v121
    %v132 = vpop.f32.mrf.mxu0
    %v133 = vadd.f32 %v105, %v132
    %v134 = vpop.f32.mrf.mxu0
    %135 = vdwg.mxu0
    %136 = vmax.xlane.f32.xlu0 %v133
    %v137 = vpop.xlane.xlu0 %136
    %v138 = vsub.f32 %v133, %v137
    %v139 = vmul.f32 %v138, 1.442695
    %v140 = vpow.pop %v139
    %141 = vadd.xlane.f32.xlu0 %v140
    %v142 = vpop.xlane.xlu0 %141
    %v143 = vrcp.pop %v142
    %v144 = vmul.f32 %v142, %v143
    %v145 = vsub.f32 2.0, %v144
    %v146 = vmul.f32 %v143, %v145
    %v147 = vmul.f32 %v140, %v146
    %148 = vst [vmem:[#allocation2] sm:$0xff] %v147
    // Predicated region
    $region18: #{tpu_custom_call.1} parent=1 // pred_check
      _
    $region19: #{tpu_custom_call.1} parent=1 // pred_check_branch
      %150 = sbr.rel (0) target = $region21
    $region20: #{tpu_custom_call.1} parent=1 // pred_region
      %152 = vsyncadd [#allocation3], 0
      %s154 = sshll.u32 [#allocation2], 4
      %s155 = int_to_ptr.vmem [resolvable:$true] %s154
      %s156 = sshll.u32 %s4, 4
      %s157 = int_to_ptr.hbm [resolvable:$true] %s156
      %159 = dma.vmem_to_hbm [thread:$0]  %s155, 128, %s157, [#allocation3]
    $region21: #{tpu_custom_call.1} parent=1 // pred_fallthru
      _
    // Predicated region
    $region22: #{tpu_custom_call.1} parent=1 // pred_check
      _
    $region23: #{tpu_custom_call.1} parent=1 // pred_check_branch
      %161 = sbr.rel (0) target = $region25
    $region24: #{tpu_custom_call.1} parent=1 // pred_region
      %163 = dma.done [#allocation3], 128
    $region25: #{tpu_custom_call.1} parent=1 // pred_fallthru
      _
    %164 = vsyncpa [#allocation3], 1

</llo_original>
